<compile_context>
chip_gen: v5e
topology: v5e:2x2
jax: 0.10.0
libtpu: 0.0.40
codegen_flags: <defaults>
</compile_context>

<pallas_src>
import math
from functools import partial

import jax
import jax.numpy as jnp
from jax.experimental import pallas as pl
from jax.experimental.pallas import tpu as pltpu


# ----------------------------------------------------------------------------
# Kernel 1: matmul + bias with VMEM-resident weights
#   grid = (cdiv(M, tm),)   -- row tiles only; w/b index_map is constant, so
#   the weight is loaded from HBM exactly once per call.
# ----------------------------------------------------------------------------
def _linear_bias_kernel(x_ref, w_ref, b_ref, o_ref):
    x = x_ref[...].astype(jnp.bfloat16)          # bf16 operands for the MXU
    w = w_ref[...].astype(jnp.bfloat16)          # (already bf16 -> no-op)
    acc = jnp.dot(x, w, preferred_element_type=jnp.float32)
    acc = acc + b_ref[...].astype(jnp.float32)
    o_ref[...] = acc.astype(o_ref.dtype)


def linear_pallas(x, w, b, *, out_dtype=None, tile_m: int = 256):
    """y = x @ w + b with x:(M,K), w:(K,N) (bf16 ok), b:(N,) -> (M,N)."""
    M, K = x.shape
    Kw, N = w.shape
    assert K == Kw and b.shape == (N,)
    out_dtype = out_dtype or x.dtype

    # 256-row tiles (fills the 256-wide MXU on v6e/v7x); small M -> one block.
    tm = M if M <= tile_m else tile_m
    grid = (pl.cdiv(M, tm),)                     # ragged tail masked by Pallas

    return pl.pallas_call(
        _linear_bias_kernel,
        out_shape=jax.ShapeDtypeStruct((M, N), out_dtype),
        grid=grid,
        in_specs=[
            pl.BlockSpec((tm, K), lambda i: (i, 0)),   # streaming x row tile
            pl.BlockSpec((K, N), lambda i: (0, 0)),    # VMEM-resident weight
            pl.BlockSpec((1, N), lambda i: (0, 0)),    # VMEM-resident bias
        ],
        out_specs=pl.BlockSpec((tm, N), lambda i: (i, 0)),
        compiler_params=pltpu.CompilerParams(
            dimension_semantics=("parallel",)),
    )(x, w, b.reshape(1, N))


# ----------------------------------------------------------------------------
# Kernel 2: fused multi-head attention, one grid step per batch element.
#   Reads the raw (N, 3*C) qkv slab (no head split/transpose on the host),
#   loops over heads inside the kernel, and writes a lane-dense (N, C) output
#   laid out exactly as the projection expects.
#   K-projection already carries the 1/sqrt(head_dim) scale (folded at init).
# ----------------------------------------------------------------------------
def _attention_kernel(qkv_ref, o_ref, *, num_heads, residual_pool,
                      residual_with_cls_embed):
    qkv = qkv_ref[...].astype(jnp.float32)       # (N, 3C)
    C = o_ref.shape[-1]
    hd = C // num_heads

    outs = []
    for h in range(num_heads):                   # static unrolled head loop
        q = qkv[:, h * hd:(h + 1) * hd]                      # (N, hd) f32
        k = qkv[:, C + h * hd:C + (h + 1) * hd]              # scale pre-folded
        v = qkv[:, 2 * C + h * hd:2 * C + (h + 1) * hd]

        # scores = q @ k^T  (contract last dims; bf16 operands, f32 acc)
        s = jax.lax.dot_general(
            q.astype(jnp.bfloat16), k.astype(jnp.bfloat16),
            (((1,), (1,)), ((), ())),
            preferred_element_type=jnp.float32)              # (N, N)
        s = s - jnp.max(s, axis=-1, keepdims=True)
        p = jnp.exp(s)
        denom = jnp.sum(p, axis=-1, keepdims=True)

        o = jnp.dot(p.astype(jnp.bfloat16), v.astype(jnp.bfloat16),
                    preferred_element_type=jnp.float32)      # (N, hd)
        o = o * pl.reciprocal(denom, approx=True)            # EUP, free-ish

        if residual_pool:
            if residual_with_cls_embed:
                o = o + q
            else:
                # x[:, :, 1:, :] += q[:, :, 1:, :] (skip the class-token row)
                rows = jax.lax.broadcasted_iota(jnp.int32, o.shape, 0)
                o = o + jnp.where(rows >= 1, q, jnp.zeros_like(q))
        outs.append(o)

    o_ref[...] = jnp.concatenate(outs, axis=-1).astype(o_ref.dtype)


def attention_pallas(qkv, *, num_heads, out_dim, residual_pool,
                     residual_with_cls_embed, out_dtype=None):
    """qkv: (B, N, 3*out_dim)  ->  (B, N, out_dim) in (B, N, H*hd) layout."""
    B, N, threeC = qkv.shape
    assert threeC == 3 * out_dim
    kern = partial(_attention_kernel, num_heads=num_heads,
                   residual_pool=residual_pool,
                   residual_with_cls_embed=residual_with_cls_embed)
    return pl.pallas_call(
        kern,
        out_shape=jax.ShapeDtypeStruct((B, N, out_dim), out_dtype or qkv.dtype),
        grid=(B,),
        in_specs=[pl.BlockSpec((None, N, threeC), lambda b: (b, 0, 0))],
        out_specs=pl.BlockSpec((None, N, out_dim), lambda b: (b, 0, 0)),
        compiler_params=pltpu.CompilerParams(
            dimension_semantics=("parallel",)),
    )(qkv)


# ----------------------------------------------------------------------------
# Module-like wrapper mirroring the PyTorch MultiscaleAttention forward
# ----------------------------------------------------------------------------
class MultiscaleAttentionPallas:
    def __init__(self, key, *, embed_dim, output_dim, num_heads,
                 residual_pool=True, residual_with_cls_embed=False,
                 prompt_length=None, previous_prompt_length=0,
                 dropout=0.0):
        assert output_dim % num_heads == 0
        if dropout > 0.0:
            raise NotImplementedError("dropout > 0 not implemented")  # TODO(synk)
        self.embed_dim = embed_dim
        self.output_dim = output_dim
        self.num_heads = num_heads
        self.head_dim = output_dim // num_heads
        self.scaler = 1.0 / math.sqrt(self.head_dim)
        self.residual_pool = residual_pool
        self.residual_with_cls_embed = residual_with_cls_embed
        self.prompt_length = prompt_length
        self.previous_prompt_length = previous_prompt_length

        k1, k2, k3, k4 = jax.random.split(key, 4)
        # Reference parameters, (in_features, out_features) layout, f32.
        self.w_qkv = 0.02 * jax.random.normal(k1, (embed_dim, 3 * output_dim),
                                              jnp.float32)
        self.b_qkv = 0.02 * jax.random.normal(k2, (3 * output_dim,), jnp.float32)
        self.w_proj = 0.02 * jax.random.normal(k3, (output_dim, output_dim),
                                               jnp.float32)
        self.b_proj = 0.02 * jax.random.normal(k4, (output_dim,), jnp.float32)

        # Kernel-side parameters (prepared once, statically):
        #   * 1/sqrt(head_dim) folded into the K projection columns (NOT Q,
        #     so the residual-pool `out += q` stays numerically identical).
        #   * weights stored bf16 (MXU-native, halves HBM/VMEM footprint);
        #     biases kept f32 (added to the f32 accumulator in-kernel).
        C = output_dim
        w_fold = self.w_qkv.at[:, C:2 * C].multiply(self.scaler)
        b_fold = self.b_qkv.at[C:2 * C].multiply(self.scaler)
        self._w_qkv_dev = w_fold.astype(jnp.bfloat16)
        self._b_qkv_dev = b_fold
        self._w_proj_dev = self.w_proj.astype(jnp.bfloat16)
        self._b_proj_dev = self.b_proj

    def __call__(self, x, thw):
        B, N, C = x.shape
        assert C == self.embed_dim

        # qkv projection: (B*N, 3*output_dim); reshape below is free (row-major).
        qkv = linear_pallas(x.reshape(B * N, C), self._w_qkv_dev,
                            self._b_qkv_dev, out_dtype=x.dtype)
        qkv = qkv.reshape(B, N, 3 * self.output_dim)

        # No pooling in this config -> k_thw == thw, q/k/v keep full length.
        out = attention_pallas(
            qkv, num_heads=self.num_heads, out_dim=self.output_dim,
            residual_pool=self.residual_pool,
            residual_with_cls_embed=self.residual_with_cls_embed,
            out_dtype=x.dtype)                      # (B, N, output_dim)

        out = linear_pallas(out.reshape(B * N, self.output_dim),
                            self._w_proj_dev, self._b_proj_dev,
                            out_dtype=x.dtype).reshape(B, N, self.output_dim)

        ret_prompt = (self.prompt_length if self.prompt_length is not None
                      else self.previous_prompt_length)
        return out, thw, ret_prompt

    # Pure-JAX f32 reference (same math as the PyTorch module, no Pallas,
    # no scale folding) for a correctness check.
    def reference(self, x, thw):
        B, N, C = x.shape
        nh, hd = self.num_heads, self.head_dim
        qkv = x.reshape(B * N, C) @ self.w_qkv + self.b_qkv
        qkv = qkv.reshape(B, N, 3, nh, hd).transpose(0, 3, 2, 1, 4)
        q, k, v = qkv[:, :, 0], qkv[:, :, 1], qkv[:, :, 2]
        attn = jnp.einsum("bhqd,bhkd->bhqk", q * self.scaler, k)
        attn = jax.nn.softmax(attn, axis=-1)
        o = jnp.einsum("bhqk,bhkd->bhqd", attn, v)
        if self.residual_pool:
            if self.residual_with_cls_embed:
                o = o + q
            else:
                o = o.at[:, :, 1:, :].add(q[:, :, 1:, :])
        o = o.transpose(0, 2, 1, 3).reshape(B * N, self.output_dim)
        o = o @ self.w_proj + self.b_proj
        return o.reshape(B, N, self.output_dim)


if __name__ == "__main__":
    key = jax.random.PRNGKey(0)
    kx, kp = jax.random.split(key)

    # Small shapes: batch=2, thw=(2,4,4), cls token + 7 prompt tokens -> N=40.
    B = 2
    thw = (2, 4, 4)
    prompt_length = 7
    N = 1 + prompt_length + thw[0] * thw[1] * thw[2]   # 40
    embed_dim = 32
    output_dim = 64
    num_heads = 2

    x = jax.random.normal(kx, (B, N, embed_dim), dtype=jnp.float32)

    mod = MultiscaleAttentionPallas(
        kp, embed_dim=embed_dim, output_dim=output_dim, num_heads=num_heads,
        residual_pool=True, residual_with_cls_embed=False,
        prompt_length=prompt_length, previous_prompt_length=0, dropout=0.0)

    y, out_thw, out_prompt = mod(x, thw)
    y = jax.block_until_ready(y)

    assert y.shape == (B, N, output_dim) and y.dtype == x.dtype
    assert tuple(out_thw) == thw and out_prompt == prompt_length
    assert bool(jnp.all(jnp.isfinite(y)))

    y_ref = jax.block_until_ready(mod.reference(x, thw))
    max_err = float(jnp.max(jnp.abs(y - y_ref)))
    # bf16 MXU operands + approx reciprocal vs. pure-f32 reference.
    assert bool(jnp.allclose(y, y_ref, rtol=2e-2, atol=2e-2)), max_err

    print("KERNEL_OK")
</pallas_src>

<mosaic_0001>
module attributes {stable_mosaic.version = 11 : i64} {
  func.func @_linear_bias_kernel(%arg0: i32, %arg1: memref<80x32xf32, #tpu.memory_space<vmem>>, %arg2: memref<32x192xbf16, #tpu.memory_space<vmem>>, %arg3: memref<1x192xf32, #tpu.memory_space<vmem>>, %arg4: memref<80x192xf32, #tpu.memory_space<vmem>>) attributes {dimension_semantics = [#tpu.dimension_semantics<parallel>], iteration_bounds = array<i64: 1>, scalar_prefetch = 0 : i64, scratch_operands = 0 : i64, tpu.core_type = #tpu.core_type<tc>, window_params = [{transform_indices = @transform_0, window_bounds = array<i64: 80, 32>}, {pipeline_mode = #tpu.pipeline_mode<synchronous>, transform_indices = @transform_1, window_bounds = array<i64: 32, 192>}, {pipeline_mode = #tpu.pipeline_mode<synchronous>, transform_indices = @transform_2, window_bounds = array<i64: 1, 192>}, {transform_indices = @transform_3, window_bounds = array<i64: 80, 192>}]} {
    %c0 = arith.constant 0 : index
    %c0_0 = arith.constant 0 : index
    %0 = vector.load %arg1[%c0, %c0_0] : memref<80x32xf32, #tpu.memory_space<vmem>>, vector<80x32xf32>
    %1 = arith.truncf %0 : vector<80x32xf32> to vector<80x32xbf16>
    %c0_1 = arith.constant 0 : index
    %c0_2 = arith.constant 0 : index
    %2 = vector.load %arg2[%c0_1, %c0_2] : memref<32x192xbf16, #tpu.memory_space<vmem>>, vector<32x192xbf16>
    %cst = arith.constant dense<0.000000e+00> : vector<80x192xf32>
    %3 = tpu.matmul %1, %2, %cst {dimension_numbers = #tpu.dot_dimension_numbers<[1], [0], [0], [1], [0, 0, 1, 1], [], []>} : vector<80x32xbf16>, vector<32x192xbf16>, vector<80x192xf32> -> vector<80x192xf32>
    %c0_3 = arith.constant 0 : index
    %c0_4 = arith.constant 0 : index
    %4 = vector.load %arg3[%c0_3, %c0_4] : memref<1x192xf32, #tpu.memory_space<vmem>>, vector<1x192xf32>
    %5 = vector.broadcast %4 : vector<1x192xf32> to vector<80x192xf32>
    %6 = arith.addf %3, %5 : vector<80x192xf32>
    %c0_5 = arith.constant 0 : index
    %c0_6 = arith.constant 0 : index
    %7 = vector.load %arg4[%c0_5, %c0_6] : memref<80x192xf32, #tpu.memory_space<vmem>>, vector<80x192xf32>
    tpu.vector_store %arg4[%c0_5, %c0_6], %6 {strides = array<i32>} : memref<80x192xf32, #tpu.memory_space<vmem>>, vector<80x192xf32>,
    return
  }
  func.func @transform_0(%arg0: i32) -> (i32, i32) {
    %c0_i32 = arith.constant 0 : i32
    %c0_i32_0 = arith.constant 0 : i32
    return %arg0, %c0_i32 : i32, i32
  }
  func.func @transform_1(%arg0: i32) -> (i32, i32) {
    %c0_i32 = arith.constant 0 : i32
    %c0_i32_0 = arith.constant 0 : i32
    %c0_i32_1 = arith.constant 0 : i32
    return %c0_i32, %c0_i32_0 : i32, i32
  }
  func.func @transform_2(%arg0: i32) -> (i32, i32) {
    %c0_i32 = arith.constant 0 : i32
    %c0_i32_0 = arith.constant 0 : i32
    %c0_i32_1 = arith.constant 0 : i32
    return %c0_i32, %c0_i32_0 : i32, i32
  }
  func.func @transform_3(%arg0: i32) -> (i32, i32) {
    %c0_i32 = arith.constant 0 : i32
    %c0_i32_0 = arith.constant 0 : i32
    return %arg0, %c0_i32 : i32, i32
  }
}

</mosaic_0001>

<llo_original>
// kernel: tpu_custom_call.1
$region0: #{tpu_custom_call.1}
  #allocation0 [shape = 'u32[]', space=smem, size = 0x4, offset = 0x4, fixed_abs, tag = 'smem constant byte address 0x4 - core index']
  #allocation1 [shape = 'u32[72,128]{1,0:T(1,128)}', space=vmem, size = 0x9000, scoped, tag = 'internal scratch']
  %s0 = inlined_call_operand.vmem [shape: f32[80,32], index: 0, kind: input, shape index: {}]
  %s1 = inlined_call_operand.vmem [shape: bf16[32,192], index: 1, kind: input, shape index: {}]
  %s2 = inlined_call_operand.vmem [shape: f32[1,192], index: 2, kind: input, shape index: {}]
  %s3 = inlined_call_operand.hbm [shape: f32[80,192], index: 3, kind: output, shape index: {}]
  %s4 = sld [smem:[#allocation0]]
  $region22: #{tpu_custom_call.1} parent=0
    _
  %s6 = ssub.s32 1, %s4
  %s7 = scalar_select 0, %s6, %s4
  $region1: #{tpu_custom_call.1} parent=0
    #allocation2 [shape = 'u8[81920]{0}', space=vmem, size = 0x14000, scoped, tag = 'output window, operand 0, single buffered']
    #allocation3 [shape = 's32[1]{0}', space=sflag, size = 0x4, scoped, tag = 'scoped memory for tpu_custom_call.1']
    %8 = vsyncpa [#allocation3], 0
    // Predicated region
    $region2: #{tpu_custom_call.1} parent=1 // pred_check
      _
    $region3: #{tpu_custom_call.1} parent=1 // pred_check_branch
      %10 = sbr.rel (0) target = $region5
    $region4: #{tpu_custom_call.1} parent=1 // pred_region
      _
    $region5: #{tpu_custom_call.1} parent=1 // pred_fallthru
      _
    // Predicated region
    $region6: #{tpu_custom_call.1} parent=1 // pred_check
      _
    $region7: #{tpu_custom_call.1} parent=1 // pred_check_branch
      %12 = sbr.rel (0) target = $region9
    $region8: #{tpu_custom_call.1} parent=1 // pred_region
      _
    $region9: #{tpu_custom_call.1} parent=1 // pred_fallthru
      _
    // Predicated region
    $region10: #{tpu_custom_call.1} parent=1 // pred_check
      _
    $region11: #{tpu_custom_call.1} parent=1 // pred_check_branch
      %14 = sbr.rel (0) target = $region13
    $region12: #{tpu_custom_call.1} parent=1 // pred_region
      _
    $region13: #{tpu_custom_call.1} parent=1 // pred_fallthru
      _
    %v16 = vld [vmem:[%s0] sm:$0xff]
    %v17 = vld [vmem:[%s0 + $0x8] sm:$0xff]
    %v18 = vld [vmem:[%s0 + $0x10] sm:$0xff]
    %v19 = vld [vmem:[%s0 + $0x18] sm:$0xff]
    %v20 = vld [vmem:[%s0 + $0x20] sm:$0xff]
    %v21 = vld [vmem:[%s0 + $0x28] sm:$0xff]
    %v22 = vld [vmem:[%s0 + $0x30] sm:$0xff]
    %v23 = vld [vmem:[%s0 + $0x38] sm:$0xff]
    %v24 = vld [vmem:[%s0 + $0x40] sm:$0xff]
    %v25 = vld [vmem:[%s0 + $0x48] sm:$0xff]
    %v26 = vpack.c.bf16 %v17, %v16
    %v27 = vpack.c.bf16 %v19, %v18
    %v28 = vpack.c.bf16 %v21, %v20
    %v29 = vpack.c.bf16 %v23, %v22
    %v30 = vpack.c.bf16 %v25, %v24
    %v31 = vld [vmem:[%s1] sm:$0xff]
    %v32 = vld [vmem:[%s1 + $0x8] sm:$0xff]
    %v33 = vld [vmem:[%s1 + $0x10] sm:$0xff]
    %v34 = vld [vmem:[%s1 + $0x18] sm:$0xff]
    %v35 = vld [vmem:[%s2] sm:$0x3]
    %v37 = vperm.slane %v35, 0
    %v38 = vperm.slane %v35, 1
    %v45 = vunpack.c.l.b16 %v31
    %v46 = vunpack.c.h.b16 %v31
    %v47 = vunpack.c.l.b16 %v32
    %v48 = vunpack.c.h.b16 %v32
    %v49 = vunpack.c.l.b16 %v33
    %v50 = vunpack.c.h.b16 %v33
    %v51 = vunpack.c.l.b16 %v34
    %v52 = vunpack.c.h.b16 %v34
    %v53 = vpack.c.b16 %v47, %v45
    %v54 = vpack.c.b16 %v48, %v46
    %v55 = vpack.c.b16 %v51, %v49
    %v56 = vpack.c.b16 %v52, %v50
    %vm61 = vcmask 261120
    %v63 = vsel %vm61, %v26, 0
    %v66 = vsel %vm61, %v27, 0
    %v69 = vsel %vm61, %v28, 0
    %v72 = vsel %vm61, %v29, 0
    %v75 = vsel %vm61, %v30, 0
    %77 = vmatpush.bf16.msra.mxu0 0
    %78 = vmatpush.bf16.msra.mxu0 0
    %79 = vmatpush.bf16.msra.mxu0 0
    %80 = vmatpush.bf16.msra.mxu0 0
    %81 = vmatpush.bf16.msra.mxu0 0
    %82 = vmatpush.bf16.msra.mxu0 0
    %83 = vmatpush.bf16.msra.mxu0 %v55
    %84 = vmatpush.bf16.msra.mxu0 %v53
    %85 = vmatmul.bf16.gmra.mxu0 %v63
    %v86 = vpop.f32.mrf.mxu0
    %v87 = vadd.f32 %v37, %v86
    %v88 = vpop.f32.mrf.mxu0
    %v89 = vadd.f32 %v37, %v88
    %90 = vmatmul.bf16.gmra.mxu0 %v66
    %v91 = vpop.f32.mrf.mxu0
    %v92 = vadd.f32 %v37, %v91
    %v93 = vpop.f32.mrf.mxu0
    %v94 = vadd.f32 %v37, %v93
    %95 = vmatmul.bf16.gmra.mxu0 %v69
    %v96 = vpop.f32.mrf.mxu0
    %v97 = vadd.f32 %v37, %v96
    %v98 = vpop.f32.mrf.mxu0
    %v99 = vadd.f32 %v37, %v98
    %100 = vmatmul.bf16.gmra.mxu0 %v72
    %v101 = vpop.f32.mrf.mxu0
    %v102 = vadd.f32 %v37, %v101
    %v103 = vpop.f32.mrf.mxu0
    %v104 = vadd.f32 %v37, %v103
    %105 = vmatmul.bf16.gmra.mxu0 %v75
    %v106 = vpop.f32.mrf.mxu0
    %v107 = vadd.f32 %v37, %v106
    %v108 = vpop.f32.mrf.mxu0
    %v109 = vadd.f32 %v37, %v108
    %110 = vdwg.mxu0
    %111 = vmatpush.bf16.msra.mxu0 0
    %112 = vmatpush.bf16.msra.mxu0 0
    %113 = vmatpush.bf16.msra.mxu0 0
    %114 = vmatpush.bf16.msra.mxu0 0
    %115 = vmatpush.bf16.msra.mxu0 0
    %116 = vmatpush.bf16.msra.mxu0 0
    %117 = vmatpush.bf16.msra.mxu0 %v56
    %118 = vmatpush.bf16.msra.mxu0 %v54
    %119 = vmatmul.bf16.gmra.mxu0 %v63
    %v120 = vpop.f32.mrf.mxu0
    %v121 = vadd.f32 %v38, %v120
    %v122 = vpop.f32.mrf.mxu0
    %v123 = vadd.f32 %v38, %v122
    %124 = vmatmul.bf16.gmra.mxu0 %v66
    %v125 = vpop.f32.mrf.mxu0
    %v126 = vadd.f32 %v38, %v125
    %v127 = vpop.f32.mrf.mxu0
    %v128 = vadd.f32 %v38, %v127
    %129 = vmatmul.bf16.gmra.mxu0 %v69
    %v130 = vpop.f32.mrf.mxu0
    %v131 = vadd.f32 %v38, %v130
    %v132 = vpop.f32.mrf.mxu0
    %v133 = vadd.f32 %v38, %v132
    %134 = vmatmul.bf16.gmra.mxu0 %v72
    %v135 = vpop.f32.mrf.mxu0
    %v136 = vadd.f32 %v38, %v135
    %v137 = vpop.f32.mrf.mxu0
    %v138 = vadd.f32 %v38, %v137
    %139 = vmatmul.bf16.gmra.mxu0 %v75
    %v140 = vpop.f32.mrf.mxu0
    %v141 = vadd.f32 %v38, %v140
    %v142 = vpop.f32.mrf.mxu0
    %v143 = vadd.f32 %v38, %v142
    %144 = vdwg.mxu0
    %145 = vst [vmem:[#allocation2] sm:$0xff] %v87
    %vm146 = vcmask 523264
    %147 = vst.msk [vmem:[#allocation2 + $0x8] sm:$0xff] %vm146, %v121
    %148 = vst [vmem:[#allocation2 + $0x10] sm:$0xff] %v89
    %149 = vst.msk [vmem:[#allocation2 + $0x18] sm:$0xff] %vm146, %v123
    %150 = vst [vmem:[#allocation2 + $0x20] sm:$0xff] %v92
    %151 = vst.msk [vmem:[#allocation2 + $0x28] sm:$0xff] %vm146, %v126
    %152 = vst [vmem:[#allocation2 + $0x30] sm:$0xff] %v94
    %153 = vst.msk [vmem:[#allocation2 + $0x38] sm:$0xff] %vm146, %v128
    %154 = vst [vmem:[#allocation2 + $0x40] sm:$0xff] %v97
    %155 = vst.msk [vmem:[#allocation2 + $0x48] sm:$0xff] %vm146, %v131
    %156 = vst [vmem:[#allocation2 + $0x50] sm:$0xff] %v99
    %157 = vst.msk [vmem:[#allocation2 + $0x58] sm:$0xff] %vm146, %v133
    %158 = vst [vmem:[#allocation2 + $0x60] sm:$0xff] %v102
    %159 = vst.msk [vmem:[#allocation2 + $0x68] sm:$0xff] %vm146, %v136
    %160 = vst [vmem:[#allocation2 + $0x70] sm:$0xff] %v104
    %161 = vst.msk [vmem:[#allocation2 + $0x78] sm:$0xff] %vm146, %v138
    %162 = vst [vmem:[#allocation2 + $0x80] sm:$0xff] %v107
    %163 = vst.msk [vmem:[#allocation2 + $0x88] sm:$0xff] %vm146, %v141
    %164 = vst [vmem:[#allocation2 + $0x90] sm:$0xff] %v109
    %165 = vst.msk [vmem:[#allocation2 + $0x98] sm:$0xff] %vm146, %v143
    // Predicated region
    $region14: #{tpu_custom_call.1} parent=1 // pred_check
      _
    $region15: #{tpu_custom_call.1} parent=1 // pred_check_branch
      %167 = sbr.rel (0) target = $region17
    $region16: #{tpu_custom_call.1} parent=1 // pred_region
      %169 = vsyncadd [#allocation3], 0
      %s170 = sshll.u32 [#allocation2], 4
      %s171 = int_to_ptr.vmem [resolvable:$true] %s170
      %s172 = sshll.u32 %s3, 4
      %s173 = int_to_ptr.hbm [resolvable:$true] %s172
      %178 = dma.vmem_to_hbm [thread:$0]  %s171, 2560, %s173, [#allocation3], 256, 256, 16
    $region17: #{tpu_custom_call.1} parent=1 // pred_fallthru
      _
    // Predicated region
    $region18: #{tpu_custom_call.1} parent=1 // pred_check
      _
    $region19: #{tpu_custom_call.1} parent=1 // pred_check_branch
      %180 = sbr.rel (0) target = $region21
    $region20: #{tpu_custom_call.1} parent=1 // pred_region
      %182 = dma.done [#allocation3], 2560
    $region21: #{tpu_custom_call.1} parent=1 // pred_fallthru
      _
    %183 = vsyncpa [#allocation3], 1

</llo_original>
